<compile_context>
chip_gen: v6e
topology: v6e:2x2x1
jax: 0.10.0
libtpu: 0.0.40
codegen_flags: <defaults>
</compile_context>

<pallas_src>
import functools

import jax
import jax.numpy as jnp
from jax.experimental import pallas as pl
from jax.experimental.pallas import tpu as pltpu


# ------------------------------- helpers ---------------------------------- #
def _round_up(x, m):
    return (x + m - 1) // m * m


def _choose_tm(T):
    if T >= 512:
        return 256  # MXU-friendly token tile for realistic token counts
    # Small T: keep >= 2 token tiles when possible (v7x has 2 TensorCores),
    # 16-row aligned so bf16 sublane packing stays unmasked.
    return max(16, _round_up(max(T // 2, 1), 16))


def _choose_fc(Fp):
    fc = 128
    while Fp % (fc * 2) == 0 and fc * 2 <= 512:
        fc *= 2
    return fc


# ----------------------------- Pallas kernel ------------------------------ #
def _make_dmoe_kernel(use_acc_scratch):
    def kernel(act_ref, fe_ref, ff_ref,              # scalar prefetch (SMEM)
               x_ref, w1_ref, w2_ref, wts_ref, b_ref,  # VMEM inputs
               o_ref, *scratch):                     # output (+ optional f32 acc)
        i = pl.program_id(0)   # token tile
        e = pl.program_id(1)   # expert (reduction axis)
        f = pl.program_id(2)   # ffn chunk (reduction axis)
        n_e = pl.num_programs(1)
        n_f = pl.num_programs(2)
        acc = scratch[0] if use_acc_scratch else o_ref   # f32 accumulator

        @pl.when((e == 0) & (f == 0))
        def _init():
            acc[...] = jnp.zeros_like(acc)

        # Skip experts that no token in this tile routes to.  The w1/w2/wts
        # index_maps also return the previously fetched block indices for
        # inactive experts, so their HBM->VMEM DMAs are elided entirely.
        @pl.when(act_ref[i, e] > 0)
        def _compute():
            # bf16 x bf16 -> f32 on the MXU
            h = jnp.dot(x_ref[...], w1_ref[0], preferred_element_type=jnp.float32)
            h = jax.nn.gelu(h, approximate=True)   # megablocks default: gelu(tanh)
            y = jnp.dot(h.astype(w2_ref.dtype), w2_ref[0],
                        preferred_element_type=jnp.float32)
            # per-token routing weight for expert e (0 for tokens not routed here)
            acc[...] += wts_ref[0] * y

        @pl.when((e == n_e - 1) & (f == n_f - 1))
        def _finalize():
            o_ref[...] = (acc[...] + b_ref[...]).astype(o_ref.dtype)

    return kernel


def dmoe_experts_pallas(x2d, w1, w2, token_expert_weights, bias, *,
                        tm=None, fc=None, compute_dtype=jnp.bfloat16):
    """x2d: (T, H); w1: (E, H, F); w2: (E, F, H);
    token_expert_weights: (T, E) dense routing weights (0 for unrouted); bias: (H,)."""
    T, H = x2d.shape
    E, _, F = w1.shape
    out_dtype = x2d.dtype

    Hp = _round_up(H, 128)                  # lane-dense hidden (unmasked stores)
    Fp = _round_up(F, 128)
    if tm is None:
        tm = _choose_tm(T)
    tm = _round_up(min(tm, _round_up(T, 16)), 16)
    Tp = _round_up(T, tm)
    if fc is None:
        fc = _choose_fc(Fp)
    assert Fp % fc == 0 and fc % 128 == 0
    nt, nf = Tp // tm, Fp // fc

    # --- pad to aligned shapes & cast to the MXU compute dtype (zero padding
    #     is exact: padded rows/cols contribute nothing, padded outputs sliced off)
    xp = jnp.pad(x2d.astype(compute_dtype), ((0, Tp - T), (0, Hp - H)))
    w1p = jnp.pad(w1.astype(compute_dtype), ((0, 0), (0, Hp - H), (0, Fp - F)))
    w2p = jnp.pad(w2.astype(compute_dtype), ((0, 0), (0, Fp - F), (0, Hp - H)))
    bp = jnp.pad(bias.astype(jnp.float32), (0, Hp - H)).reshape(1, Hp)
    wts = jnp.pad(token_expert_weights.astype(jnp.float32), ((0, Tp - T), (0, 0)))
    wts_e = wts.T.reshape(E, Tp, 1)         # expert-major for (1, tm, 1) blocks

    # --- scalar-prefetch tables: per-(tile, expert) activity, plus the block
    #     indices each step should "fetch".  Inactive steps repeat the previous
    #     step's block indices so Pallas skips the weight DMA for them.
    active = (wts.reshape(nt, tm, E) != 0.0).any(axis=1).astype(jnp.int32)  # (nt, E)
    flat_a = active.reshape(-1)                                # grid order: i outer, e inner
    flat_e = jnp.tile(jnp.arange(E, dtype=jnp.int32), nt)

    def _scan(carry, xs):
        ce, cf = carry
        a, e = xs
        ne_ = jnp.where(a > 0, e, ce)
        nf_ = jnp.where(a > 0, jnp.int32(nf - 1), cf)
        return (ne_, nf_), (ne_, cf)

    _, (fe_flat, ff_flat) = jax.lax.scan(
        _scan, (jnp.int32(0), jnp.int32(0)), (flat_a, flat_e))
    fetch_e = fe_flat.reshape(nt, E)
    fetch_f = ff_flat.reshape(nt, E)

    # --- index maps (scalar-prefetch refs arrive positionally after grid idx) ---
    def x_map(i, e, f, a, fe, ff):
        return (i, 0)

    def w1_map(i, e, f, a, fe, ff):
        ai = a[i, e]
        return (fe[i, e], 0, ai * f + (1 - ai) * ff[i, e])

    def w2_map(i, e, f, a, fe, ff):
        ai = a[i, e]
        return (fe[i, e], ai * f + (1 - ai) * ff[i, e], 0)

    def wts_map(i, e, f, a, fe, ff):
        return (fe[i, e], i, 0)

    def b_map(i, e, f, a, fe, ff):
        return (0, 0)

    def o_map(i, e, f, a, fe, ff):
        return (i, 0)

    use_acc_scratch = jnp.dtype(out_dtype) != jnp.dtype(jnp.float32)
    scratch_shapes = [pltpu.VMEM((tm, Hp), jnp.float32)] if use_acc_scratch else []

    out = pl.pallas_call(
        _make_dmoe_kernel(use_acc_scratch),
        out_shape=jax.ShapeDtypeStruct((Tp, Hp), out_dtype),
        grid_spec=pltpu.PrefetchScalarGridSpec(
            num_scalar_prefetch=3,
            grid=(nt, E, nf),
            in_specs=[
                pl.BlockSpec((tm, Hp), x_map),        # x tile (fetched once per i)
                pl.BlockSpec((1, Hp, fc), w1_map),    # w1[e][:, f-chunk]
                pl.BlockSpec((1, fc, Hp), w2_map),    # w2[e][f-chunk, :]
                pl.BlockSpec((1, tm, 1), wts_map),    # routing weights for (e, tile)
                pl.BlockSpec((1, Hp), b_map),         # bias
            ],
            out_specs=pl.BlockSpec((tm, Hp), o_map),
            scratch_shapes=scratch_shapes,
        ),
        compiler_params=pltpu.CompilerParams(
            dimension_semantics=("parallel", "arbitrary", "arbitrary"),
            vmem_limit_bytes=48 * 1024 * 1024,        # safe on v5e/v6e/v7x
        ),
    )(active, fetch_e, fetch_f, xp, w1p, w2p, wts_e, bp)

    return out[:T, :H]


# ------------------------------ glue (JAX) -------------------------------- #
def learned_router(x2d, router_w, top_k):
    # LearnedRouter: Linear(hidden -> num_experts, bias=False) -> softmax -> top-k
    logits = x2d.astype(jnp.float32) @ router_w.astype(jnp.float32)
    scores = jax.nn.softmax(logits, axis=-1)
    expert_weights, top_experts = jax.lax.top_k(scores, top_k)
    return scores, expert_weights, top_experts


@functools.partial(jax.jit, static_argnames=("top_k", "tm", "fc"))
def grouped_batched_dmoe(x, router_w, w1, w2, bias, top_k, tm=None, fc=None):
    B, S, H = x.shape
    E = w1.shape[0]
    x2d = x.reshape(-1, H)
    T = x2d.shape[0]

    scores, expert_weights, top_experts = learned_router(x2d, router_w, top_k)

    # Per-token per-expert combine weights (equivalent to the CUDA
    # sort/gather/grouped-gemm/scatter path); the kernel only computes/DMAs
    # experts that are active within each token tile.
    wts_dense = jnp.zeros((T, E), jnp.float32).at[
        jnp.arange(T, dtype=jnp.int32)[:, None], top_experts
    ].add(expert_weights.astype(jnp.float32))

    # TODO(synk): training-only load-balancing-loss bookkeeping
    # (moe.save_load_balancing_loss((tokens_per_expert, scores))) omitted.
    out2d = dmoe_experts_pallas(x2d, w1, w2, wts_dense, bias, tm=tm, fc=fc)
    return out2d.reshape(B, S, H).astype(x.dtype)


# ------------------------------ reference --------------------------------- #
def ref_forward(x, router_w, w1, w2, bias, top_k, compute_dtype=jnp.float32):
    cd = compute_dtype
    B, S, H = x.shape
    x2d = x.reshape(-1, H)
    _, ew, te = learned_router(x2d, router_w, top_k)
    xc = x2d.astype(cd).astype(jnp.float32)
    out = jnp.zeros((x2d.shape[0], H), jnp.float32)
    for e in range(w1.shape[0]):
        w1c = w1[e].astype(cd).astype(jnp.float32)
        w2c = w2[e].astype(cd).astype(jnp.float32)
        h = jax.nn.gelu(xc @ w1c, approximate=True)
        h = h.astype(cd).astype(jnp.float32)
        y = h @ w2c
        w_e = jnp.sum(jnp.where(te == e, ew, 0.0), axis=1, keepdims=True)
        out = out + w_e * y
    out = out + bias.astype(jnp.float32)
    return out.reshape(B, S, H).astype(x.dtype)


# -------------------------------- main ------------------------------------ #
if __name__ == "__main__":
    # Synthetic module config: hidden_size=32, ffn_hidden_size=256,
    # moe_num_experts=4, moe_top_k=2, bias=True, return_bias=False.
    batch, seq, hidden, ffn, n_experts, top_k = 2, 16, 32, 256, 4, 2

    key = jax.random.PRNGKey(0)
    kx, kr, k1, k2 = jax.random.split(key, 4)

    x = jax.random.normal(kx, (batch, seq, hidden), dtype=jnp.float32)
    router_w = 0.05 * jax.random.normal(kr, (hidden, n_experts), dtype=jnp.float32)
    w1 = 0.05 * jax.random.normal(k1, (n_experts, hidden, ffn), dtype=jnp.float32)
    w2 = 0.05 * jax.random.normal(k2, (n_experts, ffn, hidden), dtype=jnp.float32)
    bias = jnp.zeros((hidden,), dtype=jnp.float32)  # torch.nn.init.zeros_

    # tm=16 -> 2 token tiles (keeps both v7x TensorCores busy);
    # fc=128 -> 2 ffn chunks (exercises the F-chunked weight streaming).
    out = grouped_batched_dmoe(x, router_w, w1, w2, bias, top_k, tm=16, fc=128)
    out = jax.block_until_ready(out)

    assert out.shape == x.shape and out.dtype == x.dtype

    # Primary check: reference with the same bf16-rounded weights/activations
    # and f32 accumulation (matches the kernel's numerics tightly).
    exp_bf16 = ref_forward(x, router_w, w1, w2, bias, top_k, compute_dtype=jnp.bfloat16)
    assert jnp.allclose(out, exp_bf16, atol=1e-3, rtol=1e-3), "mismatch vs bf16 reference"

    # Sanity check vs the pure-f32 reference (tolerance covers bf16 rounding).
    exp_f32 = ref_forward(x, router_w, w1, w2, bias, top_k, compute_dtype=jnp.float32)
    assert jnp.allclose(out, exp_f32, atol=3e-2, rtol=3e-2), "mismatch vs f32 reference"

    print("KERNEL_OK")
</pallas_src>

<mosaic_0001>
module attributes {stable_mosaic.version = 11 : i64} {
  func.func private @main(%arg0: i32) attributes {dimension_semantics = [#tpu.dimension_semantics<core_parallel>], iteration_bounds = array<i64: 2>, tpu.core_type = #tpu.core_type<sc_scalar_subcore>, window_params = []} {
    return
  }
}

module attributes {stable_mosaic.version = 11 : i64} {
  func.func private @main(%arg0: i32) attributes {dimension_semantics = [#tpu.dimension_semantics<core_parallel>], iteration_bounds = array<i64: 2>, tpu.core_type = #tpu.core_type<sc_scalar_subcore>, window_params = []} {
    return
  }
}

module attributes {stable_mosaic.version = 11 : i64} {
  func.func @kernel(%arg0: i32, %arg1: i32, %arg2: i32, %arg3: memref<2x4xi32, #tpu.memory_space<smem>>, %arg4: memref<2x4xi32, #tpu.memory_space<smem>>, %arg5: memref<2x4xi32, #tpu.memory_space<smem>>, %arg6: memref<16x128xbf16, #tpu.memory_space<vmem>>, %arg7: memref<1x128x128xbf16, #tpu.memory_space<vmem>>, %arg8: memref<1x128x128xbf16, #tpu.memory_space<vmem>>, %arg9: memref<1x16x1xf32, #tpu.memory_space<vmem>>, %arg10: memref<1x128xf32, #tpu.memory_space<vmem>>, %arg11: memref<16x128xf32, #tpu.memory_space<vmem>>) attributes {dimension_semantics = [#tpu.dimension_semantics<parallel>, #tpu.dimension_semantics<arbitrary>, #tpu.dimension_semantics<arbitrary>], iteration_bounds = array<i64: 2, 4, 2>, scalar_prefetch = 3 : i64, scratch_operands = 0 : i64, tpu.core_type = #tpu.core_type<tc>, window_params = [{transform_indices = @transform_0, window_bounds = array<i64: 16, 128>}, {transform_indices = @transform_1, window_bounds = array<i64: 1, 128, 128>}, {transform_indices = @transform_2, window_bounds = array<i64: 1, 128, 128>}, {transform_indices = @transform_3, window_bounds = array<i64: 1, 16, 1>}, {pipeline_mode = #tpu.pipeline_mode<synchronous>, transform_indices = @transform_4, window_bounds = array<i64: 1, 128>}, {transform_indices = @transform_5, window_bounds = array<i64: 16, 128>}]} {
    %c0_i32 = arith.constant 0 : i32
    %0 = arith.cmpi eq, %arg1, %c0_i32 : i32
    %c0_i32_0 = arith.constant 0 : i32
    %1 = arith.cmpi eq, %arg2, %c0_i32_0 : i32
    %2 = arith.andi %0, %1 : i1
    %3 = arith.extui %2 : i1 to i32
    %c0_i32_1 = arith.constant 0 : i32
    %4 = arith.cmpi ne, %3, %c0_i32_1 : i32
    scf.if %4 {
      %cst = arith.constant 0.000000e+00 : f32
      %16 = vector.broadcast %cst : f32 to vector<16x128xf32>
      %c0 = arith.constant 0 : index
      %c0_5 = arith.constant 0 : index
      %17 = vector.load %arg11[%c0, %c0_5] : memref<16x128xf32, #tpu.memory_space<vmem>>, vector<16x128xf32>
      tpu.vector_store %arg11[%c0, %c0_5], %16 {strides = array<i32>} : memref<16x128xf32, #tpu.memory_space<vmem>>, vector<16x128xf32>,
    } else {
    }
    %5 = arith.index_cast %arg0 : i32 to index
    %6 = arith.index_cast %arg1 : i32 to index
    %7 = memref.load %arg3[%5, %6] : memref<2x4xi32, #tpu.memory_space<smem>>
    %c0_i32_2 = arith.constant 0 : i32
    %8 = arith.cmpi sgt, %7, %c0_i32_2 : i32
    %9 = arith.extui %8 : i1 to i32
    %c0_i32_3 = arith.constant 0 : i32
    %10 = arith.cmpi ne, %9, %c0_i32_3 : i32
    scf.if %10 {
      %c0 = arith.constant 0 : index
      %c0_5 = arith.constant 0 : index
      %16 = vector.load %arg6[%c0, %c0_5] : memref<16x128xbf16, #tpu.memory_space<vmem>>, vector<16x128xbf16>
      %c0_6 = arith.constant 0 : index
      %c0_7 = arith.constant 0 : index
      %c0_8 = arith.constant 0 : index
      %17 = vector.load %arg7[%c0_6, %c0_7, %c0_8] : memref<1x128x128xbf16, #tpu.memory_space<vmem>>, vector<1x128x128xbf16>
      %18 = vector.shape_cast %17 : vector<1x128x128xbf16> to vector<128x128xbf16>
      %cst = arith.constant dense<0.000000e+00> : vector<16x128xf32>
      %19 = tpu.matmul %16, %18, %cst {dimension_numbers = #tpu.dot_dimension_numbers<[1], [0], [0], [1], [0, 0, 1, 1], [], []>} : vector<16x128xbf16>, vector<128x128xbf16>, vector<16x128xf32> -> vector<16x128xf32>
      %20 = arith.mulf %19, %19 : vector<16x128xf32>
      %21 = arith.mulf %19, %20 : vector<16x128xf32>
      %cst_9 = arith.constant 4.471500e-02 : f32
      %22 = vector.broadcast %cst_9 : f32 to vector<16x128xf32>
      %23 = arith.mulf %22, %21 : vector<16x128xf32>
      %24 = arith.addf %19, %23 : vector<16x128xf32>
      %cst_10 = arith.constant 0.797884583 : f32
      %25 = vector.broadcast %cst_10 : f32 to vector<16x128xf32>
      %26 = arith.mulf %25, %24 : vector<16x128xf32>
      %27 = math.tanh %26 : vector<16x128xf32>
      %cst_11 = arith.constant 1.000000e+00 : f32
      %28 = vector.broadcast %cst_11 : f32 to vector<16x128xf32>
      %29 = arith.addf %28, %27 : vector<16x128xf32>
      %cst_12 = arith.constant 5.000000e-01 : f32
      %30 = vector.broadcast %cst_12 : f32 to vector<16x128xf32>
      %31 = arith.mulf %30, %29 : vector<16x128xf32>
      %32 = arith.mulf %19, %31 : vector<16x128xf32>
      %33 = arith.truncf %32 : vector<16x128xf32> to vector<16x128xbf16>
      %c0_13 = arith.constant 0 : index
      %c0_14 = arith.constant 0 : index
      %c0_15 = arith.constant 0 : index
      %34 = vector.load %arg8[%c0_13, %c0_14, %c0_15] : memref<1x128x128xbf16, #tpu.memory_space<vmem>>, vector<1x128x128xbf16>
      %35 = vector.shape_cast %34 : vector<1x128x128xbf16> to vector<128x128xbf16>
      %cst_16 = arith.constant dense<0.000000e+00> : vector<16x128xf32>
      %36 = tpu.matmul %33, %35, %cst_16 {dimension_numbers = #tpu.dot_dimension_numbers<[1], [0], [0], [1], [0, 0, 1, 1], [], []>} : vector<16x128xbf16>, vector<128x128xbf16>, vector<16x128xf32> -> vector<16x128xf32>
      %c0_17 = arith.constant 0 : index
      %c0_18 = arith.constant 0 : index
      %37 = vector.load %arg11[%c0_17, %c0_18] : memref<16x128xf32, #tpu.memory_space<vmem>>, vector<16x128xf32>
      %c0_19 = arith.constant 0 : index
      %c0_20 = arith.constant 0 : index
      %c0_21 = arith.constant 0 : index
      %38 = vector.load %arg9[%c0_19, %c0_20, %c0_21] : memref<1x16x1xf32, #tpu.memory_space<vmem>>, vector<1x16x1xf32>
      %39 = vector.shape_cast %38 : vector<1x16x1xf32> to vector<16x1xf32>
      %40 = vector.broadcast %39 : vector<16x1xf32> to vector<16x128xf32>
      %41 = arith.mulf %40, %36 : vector<16x128xf32>
      %42 = arith.addf %37, %41 : vector<16x128xf32>
      %c0_22 = arith.constant 0 : index
      %c0_23 = arith.constant 0 : index
      %43 = vector.load %arg11[%c0_22, %c0_23] : memref<16x128xf32, #tpu.memory_space<vmem>>, vector<16x128xf32>
      tpu.vector_store %arg11[%c0_22, %c0_23], %42 {strides = array<i32>} : memref<16x128xf32, #tpu.memory_space<vmem>>, vector<16x128xf32>,
    } else {
    }
    %c3_i32 = arith.constant 3 : i32
    %11 = arith.cmpi eq, %arg1, %c3_i32 : i32
    %c1_i32 = arith.constant 1 : i32
    %12 = arith.cmpi eq, %arg2, %c1_i32 : i32
    %13 = arith.andi %11, %12 : i1
    %14 = arith.extui %13 : i1 to i32
    %c0_i32_4 = arith.constant 0 : i32
    %15 = arith.cmpi ne, %14, %c0_i32_4 : i32
    scf.if %15 {
      %c0 = arith.constant 0 : index
      %c0_5 = arith.constant 0 : index
      %16 = vector.load %arg11[%c0, %c0_5] : memref<16x128xf32, #tpu.memory_space<vmem>>, vector<16x128xf32>
      %c0_6 = arith.constant 0 : index
      %c0_7 = arith.constant 0 : index
      %17 = vector.load %arg10[%c0_6, %c0_7] : memref<1x128xf32, #tpu.memory_space<vmem>>, vector<1x128xf32>
      %18 = vector.broadcast %17 : vector<1x128xf32> to vector<16x128xf32>
      %19 = arith.addf %16, %18 : vector<16x128xf32>
      %c0_8 = arith.constant 0 : index
      %c0_9 = arith.constant 0 : index
      %20 = vector.load %arg11[%c0_8, %c0_9] : memref<16x128xf32, #tpu.memory_space<vmem>>, vector<16x128xf32>
      tpu.vector_store %arg11[%c0_8, %c0_9], %19 {strides = array<i32>} : memref<16x128xf32, #tpu.memory_space<vmem>>, vector<16x128xf32>,
    } else {
    }
    return
  }
  func.func @transform_0(%arg0: i32, %arg1: i32, %arg2: i32, %arg3: memref<2x4xi32, #tpu.memory_space<smem>>, %arg4: memref<2x4xi32, #tpu.memory_space<smem>>, %arg5: memref<2x4xi32, #tpu.memory_space<smem>>) -> (i32, i32) {
    %c0_i32 = arith.constant 0 : i32
    %c0_i32_0 = arith.constant 0 : i32
    return %arg0, %c0_i32 : i32, i32
  }
  func.func @transform_1(%arg0: i32, %arg1: i32, %arg2: i32, %arg3: memref<2x4xi32, #tpu.memory_space<smem>>, %arg4: memref<2x4xi32, #tpu.memory_space<smem>>, %arg5: memref<2x4xi32, #tpu.memory_space<smem>>) -> (i32, i32, i32) {
    %0 = arith.index_cast %arg0 : i32 to index
    %1 = arith.index_cast %arg1 : i32 to index
    %2 = memref.load %arg3[%0, %1] : memref<2x4xi32, #tpu.memory_space<smem>>
    %3 = arith.index_cast %arg0 : i32 to index
    %4 = arith.index_cast %arg1 : i32 to index
    %5 = memref.load %arg4[%3, %4] : memref<2x4xi32, #tpu.memory_space<smem>>
    %6 = arith.muli %2, %arg2 : i32
    %c1_i32 = arith.constant 1 : i32
    %7 = arith.subi %c1_i32, %2 : i32
    %8 = arith.index_cast %arg0 : i32 to index
    %9 = arith.index_cast %arg1 : i32 to index
    %10 = memref.load %arg5[%8, %9] : memref<2x4xi32, #tpu.memory_space<smem>>
    %11 = arith.muli %7, %10 : i32
    %12 = arith.addi %6, %11 : i32
    %c0_i32 = arith.constant 0 : i32
    %c0_i32_0 = arith.constant 0 : i32
    return %5, %c0_i32, %12 : i32, i32, i32
  }
  func.func @transform_2(%arg0: i32, %arg1: i32, %arg2: i32, %arg3: memref<2x4xi32, #tpu.memory_space<smem>>, %arg4: memref<2x4xi32, #tpu.memory_space<smem>>, %arg5: memref<2x4xi32, #tpu.memory_space<smem>>) -> (i32, i32, i32) {
    %0 = arith.index_cast %arg0 : i32 to index
    %1 = arith.index_cast %arg1 : i32 to index
    %2 = memref.load %arg3[%0, %1] : memref<2x4xi32, #tpu.memory_space<smem>>
    %3 = arith.index_cast %arg0 : i32 to index
    %4 = arith.index_cast %arg1 : i32 to index
    %5 = memref.load %arg4[%3, %4] : memref<2x4xi32, #tpu.memory_space<smem>>
    %6 = arith.muli %2, %arg2 : i32
    %c1_i32 = arith.constant 1 : i32
    %7 = arith.subi %c1_i32, %2 : i32
    %8 = arith.index_cast %arg0 : i32 to index
    %9 = arith.index_cast %arg1 : i32 to index
    %10 = memref.load %arg5[%8, %9] : memref<2x4xi32, #tpu.memory_space<smem>>
    %11 = arith.muli %7, %10 : i32
    %12 = arith.addi %6, %11 : i32
    %c0_i32 = arith.constant 0 : i32
    %c0_i32_0 = arith.constant 0 : i32
    return %5, %12, %c0_i32 : i32, i32, i32
  }
  func.func @transform_3(%arg0: i32, %arg1: i32, %arg2: i32, %arg3: memref<2x4xi32, #tpu.memory_space<smem>>, %arg4: memref<2x4xi32, #tpu.memory_space<smem>>, %arg5: memref<2x4xi32, #tpu.memory_space<smem>>) -> (i32, i32, i32) {
    %0 = arith.index_cast %arg0 : i32 to index
    %1 = arith.index_cast %arg1 : i32 to index
    %2 = memref.load %arg4[%0, %1] : memref<2x4xi32, #tpu.memory_space<smem>>
    %c0_i32 = arith.constant 0 : i32
    %c0_i32_0 = arith.constant 0 : i32
    return %2, %arg0, %c0_i32 : i32, i32, i32
  }
  func.func @transform_4(%arg0: i32, %arg1: i32, %arg2: i32, %arg3: memref<2x4xi32, #tpu.memory_space<smem>>, %arg4: memref<2x4xi32, #tpu.memory_space<smem>>, %arg5: memref<2x4xi32, #tpu.memory_space<smem>>) -> (i32, i32) {
    %c0_i32 = arith.constant 0 : i32
    %c0_i32_0 = arith.constant 0 : i32
    %c0_i32_1 = arith.constant 0 : i32
    return %c0_i32, %c0_i32_0 : i32, i32
  }
  func.func @transform_5(%arg0: i32, %arg1: i32, %arg2: i32, %arg3: memref<2x4xi32, #tpu.memory_space<smem>>, %arg4: memref<2x4xi32, #tpu.memory_space<smem>>, %arg5: memref<2x4xi32, #tpu.memory_space<smem>>) -> (i32, i32) {
    %c0_i32 = arith.constant 0 : i32
    %c0_i32_0 = arith.constant 0 : i32
    return %arg0, %c0_i32 : i32, i32
  }
}

</mosaic_0001>

<llo_original>
// kernel: custom-call.2
$region0: #{custom-call.2}
  %s0 = inlined_call_operand.vmem [shape: s32[8], index: 0, kind: output, shape index: {}]

// kernel: tile.9
$region0: #{tile.9}
  %s0 = inlined_call_operand.vmem [shape: s32[2,4], index: 0, kind: input, shape index: {}]
  %s1 = inlined_call_operand.vmem [shape: s32[8], index: 1, kind: output, shape index: {}]
  $region1: #{tile.9} parent=0
    #allocation0 [shape = 'u8[4096]{0}', space=vmem, size = 0x1000, scoped, tag = 'scoped mem for output reshape']
    #allocation1 [shape = 'u8[4096]{0}', space=vmem, size = 0x1000, scoped, tag = 'scoped mem for input reshape']
    %s3 = sshll.u32 1, 2
    %s4 = ssub.s32 %s3, 1
    %v5 = vld [vmem:[%s0] sm:%s4]
    %6 = vst [vmem:[#allocation1] sm:%s4] %v5
    %v7 = vld [vmem:[#allocation1] sm:$0x1]
    %vm8 = vcmask 31744
    %9 = vst.msk [vmem:[#allocation0] sm:$0x1] %vm8, %v7
    %s10 = scalar_lea.vmem [#allocation1], 1
    %v11 = vld [vmem:[%s10] sm:$0x1]
    %12 = vrot.lane.b32.xlu0 %v11, 4
    %v13 = vpop.permute.xlu0 %12
    %vm14 = vcmask 64544
    %15 = vst.msk [vmem:[#allocation0] sm:$0x1] %vm14, %v13
    %s17 = sshll.u32 1, 1
    %s18 = ssub.s32 %s17, 1
    %v20 = vld [vmem:[#allocation0] sm:%s18]
    %s21 = sshll.u32 1, 1
    %s22 = ssub.s32 %s21, 1
    %23 = vst [vmem:[%s1] sm:%s22] %v20

// kernel: grouped_batched_dmoe.1
$region0: #{grouped_batched_dmoe.1}
  #allocation0 [shape = 'u32[]', space=smem, size = 0x4, offset = 0x4, fixed_abs, tag = 'smem constant byte address 0x4 - core index']
  #allocation1 [shape = 'u32[144,128]{1,0:T(1,128)}', space=vmem, size = 0x12000, scoped, tag = 'internal scratch']
  #allocation2 [shape = 's32[1]{0}', space=sflag, size = 0x4, scoped, tag = 'scoped memory for grouped_batched_dmoe.1']
  #allocation3 [shape = 'u8[1024]{0}', space=smem, size = 0x400, scoped, tag = 'prefetched SMEM operand 0']
  #allocation4 [shape = 'u8[1024]{0}', space=smem, size = 0x400, scoped, tag = 'prefetched SMEM operand 1']
  #allocation5 [shape = 'u8[1024]{0}', space=smem, size = 0x400, scoped, tag = 'prefetched SMEM operand 2']
  %s0 = inlined_call_operand.vmem [shape: s32[2,4], index: 0, kind: input, shape index: {}]
  %s1 = inlined_call_operand.vmem [shape: s32[2,4], index: 1, kind: input, shape index: {}]
  %s2 = inlined_call_operand.vmem [shape: s32[2,4], index: 2, kind: input, shape index: {}]
  %s3 = inlined_call_operand.vmem [shape: bf16[32,128], index: 3, kind: input, shape index: {}]
  %s4 = inlined_call_operand.vmem [shape: bf16[4,128,256], index: 4, kind: input, shape index: {}]
  %s5 = inlined_call_operand.vmem [shape: bf16[4,256,128], index: 5, kind: input, shape index: {}]
  %s6 = inlined_call_operand.vmem [shape: f32[4,32,1], index: 6, kind: input, shape index: {}]
  %s7 = inlined_call_operand.vmem [shape: f32[1,128], index: 7, kind: input, shape index: {}]
  %s8 = inlined_call_operand.hbm [shape: f32[32,128], index: 8, kind: output, shape index: {}]
  %s9 = sld [smem:[#allocation0]]
  $region106: #{grouped_batched_dmoe.1} parent=0
    _
  %s11 = ssub.s32 1, %s9
  %s12 = scalar_select 0, %s11, %s9
  %s13 = sshll.u32 %s0, 4
  %s14 = int_to_ptr.vmem [resolvable:$true] %s13
  %16 = dma.vmem_to_smem %s14, 32, [#allocation3], [#allocation2]
  %s17 = sshll.u32 %s1, 4
  %s18 = int_to_ptr.vmem [resolvable:$true] %s17
  %20 = dma.vmem_to_smem %s18, 32, [#allocation4], [#allocation2]
  %s21 = sshll.u32 %s2, 4
  %s22 = int_to_ptr.vmem [resolvable:$true] %s21
  %24 = dma.vmem_to_smem %s22, 32, [#allocation5], [#allocation2]
  %25 = dma.done [#allocation2], 96
  %26 = sfence
  $region1: #{grouped_batched_dmoe.1} parent=0
    #allocation6 [shape = 'u8[65536]{0}', space=vmem, size = 0x10000, scoped, tag = 'input window, operand 4']
    #allocation7 [shape = 'u8[16384]{0}', space=vmem, size = 0x4000, scoped, tag = 'output window, operand 0']
    #allocation8 [shape = 's32[2]{0}', space=sflag, size = 0x8, scoped, tag = 'scoped memory for grouped_batched_dmoe.1']
    %27 = vsyncpa [#allocation8], 0
    %s28 = scalar_lea.sflag [#allocation8], 1
    %29 = vsyncpa %s28, 0
    loop: start=0, step=1, limit=18
    $region2: #{grouped_batched_dmoe.1} parent=1 // loop_pre_header
      _
    $region3: #{grouped_batched_dmoe.1} parent=1 // loop_header
      %s31 = sphi 0, %s35
      %p32 = scmp.ge.s32.totalorder %s31, 18
      %s38 = sphi 0, %s57
      %s39 = sphi 0, %s53
      %s40 = sphi 0, %s49
      %s41 = sphi 0, %s38
      %s42 = sphi 0, %s39
      %s43 = sphi 0, %s40
      %s44 = sphi 0, %s41
      %s45 = sphi 0, %s42
      %s46 = sphi 0, %s43
      %s60 = sphi 0, %s62
      %s63 = sphi 0, %s60
      %s64 = sphi 0, %s63
      %s80 = sphi 0, %s64
      %s116 = sphi 0, %s118
      %s119 = sphi 0, %s116
      %s120 = sphi 0, %s119
      %s136 = sphi 0, %s120
      %s172 = sphi 0, %s174
      %s175 = sphi 0, %s172
      %s176 = sphi 0, %s175
      %s192 = sphi 0, %s176
      %s216 = sphi 0, %s218
      %s219 = sphi 0, %s216
      %s220 = sphi 0, %s219
      %s236 = sphi 0, %s220
      %s240 = sphi 0, %s240
      %s242 = sphi 0, %s240
      %s243 = sphi 0, %s242
      %s257 = sphi 0, %s243
      %s263 = sphi 0, %s265
      %s266 = sphi 0, %s263
      %s267 = sphi 0, %s266
      %s283 = sphi 0, %s267
    $region4: #{grouped_batched_dmoe.1} parent=1 // loop_header_branch
      %34 = sbr.rel (%p32) target = $region8
    $region5: #{grouped_batched_dmoe.1} parent=1 // loop_body
      %s36 = ssub.s32 %s31, 1
      %s37 = ssub.s32 %s31, 2
      %s47 = sadd.s32 1, %s40
      %p48 = scmp.ge.s32.totalorder %s47, 2
      %s49 = scalar_select %p48, 0, %s47
      %s50 = sadd.s32 1, %s39
      %s51 = scalar_select %p48, %s50, %s39
      %p52 = scmp.ge.s32.totalorder %s51, 4
      %s53 = scalar_select %p52, 0, %s51
      %s54 = sadd.s32 1, %s38
      %s55 = scalar_select %p52, %s54, %s38
      %p56 = scmp.ge.s32.totalorder %s55, 2
      %s57 = scalar_select %p56, 0, %s55
      %s58 = ssub.s32 %s38, %s57
      %p59 = scmp.eq.s32.totalorder %s58, 0
      %s61 = sadd.s32 %s60, 1
      %s62 = scalar_select %p59, %s60, %s61
      %p65 = pneg %p59
      %p66 = scmp.eq.s32.totalorder %s31, 15
      %p67 = por %p65, %p66
      %p68 = scmp.ne.s32.totalorder %s60, %s63
      %p69 = scmp.eq.s32.totalorder %s31, 0
      %p70 = por %p68, %p69
      %p71 = scmp.ne.s32.totalorder %s60, %s63
      %p72 = scmp.eq.s32.totalorder %s36, 15
      %p73 = por %p71, %p72
      %p74 = scmp.ne.s32.totalorder %s63, %s64
      %p75 = scmp.eq.s32.totalorder %s36, 0
      %p76 = por %p74, %p75
      %p77 = scmp.ne.s32.totalorder %s63, %s64
      %p78 = scmp.eq.s32.totalorder %s37, 15
      %p79 = por %p77, %p78
      %p81 = scmp.ne.s32.totalorder %s64, %s80
      %p82 = scmp.eq.s32.totalorder %s37, 0
      %p83 = por %p81, %p82
      %s84 = sshra.s32 %s39, 7
      %s85 = sand.u32 %s39, 127
      %s86 = sadd.s32 %s84, %s38
      %s87 = smul.u32 %s86, 128
      %s88 = sshra.s32 %s39, 7
      %s89 = sand.u32 %s39, 127
      %s90 = sadd.s32 %s87, %s89
      %s91 = sld [smem:[#allocation3 + %s90]]
      %s92 = sld [smem:[#allocation4 + %s90]]
      %s93 = smul.u32 %s91, %s40
      %s94 = ssub.s32 1, %s91
      %s95 = sld [smem:[#allocation5 + %s90]]
      %s96 = smul.u32 %s94, %s95
      %s97 = sadd.s32 %s93, %s96
      %s98 = sshra.s32 %s53, 7
      %s99 = sand.u32 %s53, 127
      %s100 = sadd.s32 %s98, %s57
      %s101 = smul.u32 %s100, 128
      %s102 = sshra.s32 %s53, 7
      %s103 = sand.u32 %s53, 127
      %s104 = sadd.s32 %s101, %s103
      %s105 = sld [smem:[#allocation3 + %s104]]
      %s106 = sld [smem:[#allocation4 + %s104]]
      %s107 = smul.u32 %s105, %s49
      %s108 = ssub.s32 1, %s105
      %s109 = sld [smem:[#allocation5 + %s104]]
      %s110 = smul.u32 %s108, %s109
      %s111 = sadd.s32 %s107, %s110
      %s112 = ssub.s32 %s92, %s106
      %s113 = ssub.s32 %s97, %s111
      %s114 = sor.u32 %s112, %s113
      %p115 = scmp.eq.s32.totalorder %s114, 0
      %s117 = sadd.s32 %s116, 1
      %s118 = scalar_select %p115, %s116, %s117
      %p121 = pneg %p115
      %p122 = scmp.eq.s32.totalorder %s31, 15
      %p123 = por %p121, %p122
      %p124 = scmp.ne.s32.totalorder %s116, %s119
      %p125 = scmp.eq.s32.totalorder %s31, 0
      %p126 = por %p124, %p125
      %p127 = scmp.ne.s32.totalorder %s116, %s119
      %p128 = scmp.eq.s32.totalorder %s36, 15
      %p129 = por %p127, %p128
      %p130 = scmp.ne.s32.totalorder %s119, %s120
      %p131 = scmp.eq.s32.totalorder %s36, 0
      %p132 = por %p130, %p131
      %p133 = scmp.ne.s32.totalorder %s119, %s120
      %p134 = scmp.eq.s32.totalorder %s37, 15
      %p135 = por %p133, %p134
      %p137 = scmp.ne.s32.totalorder %s120, %s136
      %p138 = scmp.eq.s32.totalorder %s37, 0
      %p139 = por %p137, %p138
      %s140 = sshra.s32 %s39, 7
      %s141 = sand.u32 %s39, 127
      %s142 = sadd.s32 %s140, %s38
      %s143 = smul.u32 %s142, 128
      %s144 = sshra.s32 %s39, 7
      %s145 = sand.u32 %s39, 127
      %s146 = sadd.s32 %s143, %s145
      %s147 = sld [smem:[#allocation3 + %s146]]
      %s148 = sld [smem:[#allocation4 + %s146]]
      %s149 = smul.u32 %s147, %s40
      %s150 = ssub.s32 1, %s147
      %s151 = sld [smem:[#allocation5 + %s146]]
      %s152 = smul.u32 %s150, %s151
      %s153 = sadd.s32 %s149, %s152
      %s154 = sshra.s32 %s53, 7
      %s155 = sand.u32 %s53, 127
      %s156 = sadd.s32 %s154, %s57
      %s157 = smul.u32 %s156, 128
      %s158 = sshra.s32 %s53, 7
      %s159 = sand.u32 %s53, 127
      %s160 = sadd.s32 %s157, %s159
      %s161 = sld [smem:[#allocation3 + %s160]]
      %s162 = sld [smem:[#allocation4 + %s160]]
      %s163 = smul.u32 %s161, %s49
      %s164 = ssub.s32 1, %s161
      %s165 = sld [smem:[#allocation5 + %s160]]
      %s166 = smul.u32 %s164, %s165
      %s167 = sadd.s32 %s163, %s166
      %s168 = ssub.s32 %s148, %s162
      %s169 = ssub.s32 %s153, %s167
      %s170 = sor.u32 %s168, %s169
      %p171 = scmp.eq.s32.totalorder %s170, 0
      %s173 = sadd.s32 %s172, 1
      %s174 = scalar_select %p171, %s172, %s173
      %p177 = pneg %p171
      %p178 = scmp.eq.s32.totalorder %s31, 15
      %p179 = por %p177, %p178
      %p180 = scmp.ne.s32.totalorder %s172, %s175
      %p181 = scmp.eq.s32.totalorder %s31, 0
      %p182 = por %p180, %p181
      %p183 = scmp.ne.s32.totalorder %s172, %s175
      %p184 = scmp.eq.s32.totalorder %s36, 15
      %p185 = por %p183, %p184
      %p186 = scmp.ne.s32.totalorder %s175, %s176
      %p187 = scmp.eq.s32.totalorder %s36, 0
      %p188 = por %p186, %p187
      %p189 = scmp.ne.s32.totalorder %s175, %s176
      %p190 = scmp.eq.s32.totalorder %s37, 15
      %p191 = por %p189, %p190
      %p193 = scmp.ne.s32.totalorder %s176, %s192
      %p194 = scmp.eq.s32.totalorder %s37, 0
      %p195 = por %p193, %p194
      %s196 = sshra.s32 %s39, 7
      %s197 = sand.u32 %s39, 127
      %s198 = sadd.s32 %s196, %s38
      %s199 = smul.u32 %s198, 128
      %s200 = sshra.s32 %s39, 7
      %s201 = sand.u32 %s39, 127
      %s202 = sadd.s32 %s199, %s201
      %s203 = sld [smem:[#allocation4 + %s202]]
      %s204 = sshra.s32 %s53, 7
      %s205 = sand.u32 %s53, 127
      %s206 = sadd.s32 %s204, %s57
      %s207 = smul.u32 %s206, 128
      %s208 = sshra.s32 %s53, 7
      %s209 = sand.u32 %s53, 127
      %s210 = sadd.s32 %s207, %s209
      %s211 = sld [smem:[#allocation4 + %s210]]
      %s212 = ssub.s32 %s203, %s211
      %s213 = ssub.s32 %s38, %s57
      %s214 = sor.u32 %s212, %s213
      %p215 = scmp.eq.s32.totalorder %s214, 0
      %s217 = sadd.s32 %s216, 1
      %s218 = scalar_select %p215, %s216, %s217
      %p221 = pneg %p215
      %p222 = scmp.eq.s32.totalorder %s31, 15
      %p223 = por %p221, %p222
      %p224 = scmp.ne.s32.totalorder %s216, %s219
      %p225 = scmp.eq.s32.totalorder %s31, 0
      %p226 = por %p224, %p225
      %p227 = scmp.ne.s32.totalorder %s216, %s219
      %p228 = scmp.eq.s32.totalorder %s36, 15
      %p229 = por %p227, %p228
      %p230 = scmp.ne.s32.totalorder %s219, %s220
      %p231 = scmp.eq.s32.totalorder %s36, 0
      %p232 = por %p230, %p231
      %p233 = scmp.ne.s32.totalorder %s219, %s220
      %p234 = scmp.eq.s32.totalorder %s37, 15
      %p235 = por %p233, %p234
      %p237 = scmp.ne.s32.totalorder %s220, %s236
      %p238 = scmp.eq.s32.totalorder %s37, 0
      %p239 = por %p237, %p238
      %s241 = sadd.s32 %s240, 1
      %p244 = scmp.eq.s32.totalorder %s31, 15
      %p245 = scmp.ne.s32.totalorder %s240, %s242
      %p246 = scmp.eq.s32.totalorder %s31, 0
      %p247 = por %p245, %p246
      %p248 = scmp.ne.s32.totalorder %s240, %s242
      %p249 = scmp.eq.s32.totalorder %s36, 15
      %p250 = por %p248, %p249
      %p251 = scmp.ne.s32.totalorder %s242, %s243
      %p252 = scmp.eq.s32.totalorder %s36, 0
      %p253 = por %p251, %p252
      %p254 = scmp.ne.s32.totalorder %s242, %s243
      %p255 = scmp.eq.s32.totalorder %s37, 15
      %p256 = por %p254, %p255
      %p258 = scmp.ne.s32.totalorder %s243, %s257
      %p259 = scmp.eq.s32.totalorder %s37, 0
      %p260 = por %p258, %p259
      %s261 = ssub.s32 %s38, %s57
      %p262 = scmp.eq.s32.totalorder %s261, 0
      %s264 = sadd.s32 %s263, 1
      %s265 = scalar_select %p262, %s263, %s264
      %p268 = pneg %p262
      %p269 = scmp.eq.s32.totalorder %s31, 15
      %p270 = por %p268, %p269
      %p271 = scmp.ne.s32.totalorder %s263, %s266
      %p272 = scmp.eq.s32.totalorder %s31, 0
      %p273 = por %p271, %p272
      %p274 = scmp.ne.s32.totalorder %s263, %s266
      %p275 = scmp.eq.s32.totalorder %s36, 15
      %p276 = por %p274, %p275
      %p277 = scmp.ne.s32.totalorder %s266, %s267
      %p278 = scmp.eq.s32.totalorder %s36, 0
      %p279 = por %p277, %p278
      %p280 = scmp.ne.s32.totalorder %s266, %s267
      %p281 = scmp.eq.s32.totalorder %s37, 15
      %p282 = por %p280, %p281
      %p284 = scmp.ne.s32.totalorder %s267, %s283
      %p285 = scmp.eq.s32.totalorder %s37, 0
      %p286 = por %p284, %p285
      %p287 = scmp.le.s32.totalorder 1, %s31
      %p288 = scmp.lt.s32.totalorder %s31, 17
      %p289 = pnand %p287, %p288
      %p290 = pneg %p289
      // Predicated region
      $region9: #{grouped_batched_dmoe.1} parent=5 // pred_check
        _
      $region10: #{grouped_batched_dmoe.1} parent=5 // pred_check_branch
        %292 = sbr.rel (%p289) target = $region12
      $region11: #{grouped_batched_dmoe.1} parent=5 // pred_region
        %s293 = ssub.s32 %s31, 1
        // Predicated region
        $region13: #{grouped_batched_dmoe.1} parent=11 // pred_check
          %p294 = pneg %p253
        $region14: #{grouped_batched_dmoe.1} parent=11 // pred_check_branch
          %296 = sbr.rel (%p294) target = $region16
        $region15: #{grouped_batched_dmoe.1} parent=11 // pred_region
          _
        $region16: #{grouped_batched_dmoe.1} parent=11 // pred_fallthru
          _
      $region12: #{grouped_batched_dmoe.1} parent=5 // pred_fallthru
        _
      %p297 = scmp.lt.s32.totalorder %s31, 16
      // Predicated region
      $region17: #{grouped_batched_dmoe.1} parent=5 // pred_check
        %p298 = pneg %p297
      $region18: #{grouped_batched_dmoe.1} parent=5 // pred_check_branch
        %300 = sbr.rel (%p298) target = $region20
      $region19: #{grouped_batched_dmoe.1} parent=5 // pred_region
        // Predicated region
        $region21: #{grouped_batched_dmoe.1} parent=19 // pred_check
          %p301 = pneg %p70
        $region22: #{grouped_batched_dmoe.1} parent=19 // pred_check_branch
          %303 = sbr.rel (%p301) target = $region24
        $region23: #{grouped_batched_dmoe.1} parent=19 // pred_region
          %s304 = smul.u32 2, %s38
          %p305 = scmp.lt.s32.totalorder %s304, 3
          %s306 = scalar_select %p305, %s304, 3
          %s307 = smul.addr %s306, 4
          %s308 = scalar_lea.vmem %s3, %s307
          %s309 = smul.u32 2, %s38
        $region24: #{grouped_batched_dmoe.1} parent=19 // pred_fallthru
          _
        // Predicated region
        $region25: #{grouped_batched_dmoe.1} parent=19 // pred_check
          %p310 = pneg %p126
        $region26: #{grouped_batched_dmoe.1} parent=19 // pred_check_branch
          %312 = sbr.rel (%p310) target = $region28
        $region27: #{grouped_batched_dmoe.1} parent=19 // pred_region
          %s313 = sand.u32 %s116, 1
          %s314 = sand.u32 %s116, 1
          %s315 = smul.addr %s314, 64
          %s316 = scalar_lea.vmem [#allocation6], %s315
          %s317 = sshra.s32 %s39, 7
          %s318 = sand.u32 %s39, 127
          %s319 = sadd.s32 %s317, %s38
          %s320 = smul.u32 %s319, 128
          %s321 = sshra.s32 %s39, 7
          %s322 = sand.u32 %s39, 127
          %s323 = sadd.s32 %s320, %s322
          %s324 = sld [smem:[#allocation3 + %s323]]
          %s325 = sld [smem:[#allocation4 + %s323]]
          %s326 = smul.u32 %s324, %s40
          %s327 = ssub.s32 1, %s324
          %s328 = sld [smem:[#allocation5 + %s323]]
          %s329 = smul.u32 %s327, %s328
          %s330 = sadd.s32 %s326, %s329
          %s331 = smul.addr %s325, 32
          %s332 = sadd.s32 %s330, %s331
          %s333 = smul.addr %s332, 4
          %s334 = scalar_lea.vmem %s4, %s333
          // Predicated region
          $region29: #{grouped_batched_dmoe.1} parent=27 // pred_check
            _
          $region30: #{grouped_batched_dmoe.1} parent=27 // pred_check_branch
            %336 = sbr.rel (0) target = $region32
          $region31: #{grouped_batched_dmoe.1} parent=27 // pred_region
            // Predicated region
            $region33: #{grouped_batched_dmoe.1} parent=31 // pred_check
              _
            $region34: #{grouped_batched_dmoe.1} parent=31 // pred_check_branch
              %338 = sbr.rel target = $region36
            $region35: #{grouped_batched_dmoe.1} parent=31 // pred_region
              // Predicated region
              $region48: #{grouped_batched_dmoe.1} parent=35 // pred_check
                _
              $region49: #{grouped_batched_dmoe.1} parent=35 // pred_check_branch
                %384 = sbr.rel (0) target = $region51
              $region50: #{grouped_batched_dmoe.1} parent=35 // pred_region
                loop: start=0, step=1, limit=1
                $region52: #{grouped_batched_dmoe.1} parent=50 // loop_pre_header
                  _
                $region53: #{grouped_batched_dmoe.1} parent=50 // loop_header
                  %s386 = sphi 0, %s390
                  %p387 = scmp.ge.s32.totalorder %s386, 1
                  %s391 = sphi %s334, %s334
                  %s392 = sphi %s316, %s316
                $region54: #{grouped_batched_dmoe.1} parent=50 // loop_header_branch
                  %389 = sbr.rel (%p387) target = $region58
                $region55: #{grouped_batched_dmoe.1} parent=50 // loop_body
                  _
                $region56: #{grouped_batched_dmoe.1} parent=50 // loop_footer
                  %s390 = sadd.s32 1, %s386
                $region57: #{grouped_batched_dmoe.1} parent=50 // loop_footer_branch
                  %385 = sbr.rel target = $region53
                $region58: #{grouped_batched_dmoe.1} parent=50 // loop_exit
                  _
                %s394 = ssub.s32 16, 1
                loop: start=0, step=1, limit=1
                $region59: #{grouped_batched_dmoe.1} parent=50 // loop_pre_header
                  _
                $region60: #{grouped_batched_dmoe.1} parent=50 // loop_header
                  %s396 = sphi 0, %s400
                  %p397 = scmp.ge.s32.totalorder %s396, 1
                  %s401 = sphi %s334, %s334
                  %s402 = sphi %s316, %s316
                $region61: #{grouped_batched_dmoe.1} parent=50 // loop_header_branch
                  %399 = sbr.rel (%p397) target = $region65
                $region62: #{grouped_batched_dmoe.1} parent=50 // loop_body
                  %v403 = vld [vmem:[%s401] sm:%s394]
                  %404 = vst [vmem:[%s402] sm:%s394] %v403
                  %v405 = vld [vmem:[%s401 + $0x8] sm:%s394]
                  %406 = vst [vmem:[%s402 + $0x4] sm:%s394] %v405
                  %v407 = vld [vmem:[%s401 + $0x10] sm:%s394]
                  %408 = vst [vmem:[%s402 + $0x8] sm:%s394] %v407
                  %v409 = vld [vmem:[%s401 + $0x18] sm:%s394]
                  %410 = vst [vmem:[%s402 + $0xc] sm:%s394] %v409
                  %v411 = vld [vmem:[%s401 + $0x20] sm:%s394]
                  %412 = vst [vmem:[%s402 + $0x10] sm:%s394] %v411
                  %v413 = vld [vmem:[%s401 + $0x28] sm:%s394]
                  %414 = vst [vmem:[%s402 + $0x14] sm:%s394] %v413
                  %v415 = vld [vmem:[%s401 + $0x30] sm:%s394]
                  %416 = vst [vmem:[%s402 + $0x18] sm:%s394] %v415
                  %v417 = vld [vmem:[%s401 + $0x38] sm:%s394]
                  %418 = vst [vmem:[%s402 + $0x1c] sm:%s394] %v417
                  %v419 = vld [vmem:[%s401 + $0x40] sm:%s394]
                  %420 = vst [vmem:[%s402 + $0x20] sm:%s394] %v419
                  %v421 = vld [vmem:[%s401 + $0x48] sm:%s394]
                  %422 = vst [vmem:[%s402 + $0x24] sm:%s394] %v421
                  %v423 = vld [vmem:[%s401 + $0x50] sm:%s394]
                  %424 = vst [vmem:[%s402 + $0x28] sm:%s394] %v423
                  %v425 = vld [vmem:[%s401 + $0x58] sm:%s394]
                  %426 = vst [vmem:[%s402 + $0x2c] sm:%s394] %v425
                  %v427 = vld [vmem:[%s401 + $0x60] sm:%s394]
                  %428 = vst [vmem:[%s402 + $0x30] sm:%s394] %v427
                  %v429 = vld [vmem:[%s401 + $0x68] sm:%s394]
                  %430 = vst [vmem:[%s402 + $0x34] sm:%s394] %v429
                  %v431 = vld [vmem:[%s401 + $0x70] sm:%s394]
                  %432 = vst [vmem:[%s402 + $0x38] sm:%s394] %v431
                  %v433 = vld [vmem:[%s401 + $0x78] sm:%s394]
                  %434 = vst [vmem:[%s402 + $0x3c] sm:%s394] %v433
                $region63: #{grouped_batched_dmoe.1} parent=50 // loop_footer
                  %s400 = sadd.s32 1, %s396
                $region64: #{grouped_batched_dmoe.1} parent=50 // loop_footer_branch
                  %395 = sbr.rel target = $region60
                $region65: #{grouped_batched_dmoe.1} parent=50 // loop_exit
                  _
              $region51: #{grouped_batched_dmoe.1} parent=35 // pred_fallthru
                _
            $region36: #{grouped_batched_dmoe.1} parent=31 // pred_fallthru
              _
            // Predicated region
            $region37: #{grouped_batched_dmoe.1} parent=31 // pred_check
              _
            $region38: #{grouped_batched_dmoe.1} parent=31 // pred_check_branch
              %340 = sbr.rel (0) target = $region40
            $region39: #{grouped_batched_dmoe.1} parent=31 // pred_region
              %s342 = ssub.s32 16, 1
              loop: start=0, step=1, limit=1
              $region41: #{grouped_batched_dmoe.1} parent=39 // loop_pre_header
                _
              $region42: #{grouped_batched_dmoe.1} parent=39 // loop_header
                %s344 = sphi 0, %s348
                %p345 = scmp.ge.s32.totalorder %s344, 1
                %s349 = sphi %s334, %s334
                %s350 = sphi %s316, %s316
              $region43: #{grouped_batched_dmoe.1} parent=39 // loop_header_branch
                %347 = sbr.rel (%p345) target = $region47
              $region44: #{grouped_batched_dmoe.1} parent=39 // loop_body
                %v351 = vld [vmem:[%s349] sm:%s342]
                %352 = vst [vmem:[%s350] sm:%s342] %v351
                %v353 = vld [vmem:[%s349 + $0x8] sm:%s342]
                %354 = vst [vmem:[%s350 + $0x4] sm:%s342] %v353
                %v355 = vld [vmem:[%s349 + $0x10] sm:%s342]
                %356 = vst [vmem:[%s350 + $0x8] sm:%s342] %v355
                %v357 = vld [vmem:[%s349 + $0x18] sm:%s342]
                %358 = vst [vmem:[%s350 + $0xc] sm:%s342] %v357
                %v359 = vld [vmem:[%s349 + $0x20] sm:%s342]
                %360 = vst [vmem:[%s350 + $0x10] sm:%s342] %v359
                %v361 = vld [vmem:[%s349 + $0x28] sm:%s342]
                %362 = vst [vmem:[%s350 + $0x14] sm:%s342] %v361
                %v363 = vld [vmem:[%s349 + $0x30] sm:%s342]
                %364 = vst [vmem:[%s350 + $0x18] sm:%s342] %v363
                %v365 = vld [vmem:[%s349 + $0x38] sm:%s342]
                %366 = vst [vmem:[%s350 + $0x1c] sm:%s342] %v365
                %v367 = vld [vmem:[%s349 + $0x40] sm:%s342]
                %368 = vst [vmem:[%s350 + $0x20] sm:%s342] %v367
                %v369 = vld [vmem:[%s349 + $0x48] sm:%s342]
                %370 = vst [vmem:[%s350 + $0x24] sm:%s342] %v369
                %v371 = vld [vmem:[%s349 + $0x50] sm:%s342]
                %372 = vst [vmem:[%s350 + $0x28] sm:%s342] %v371
                %v373 = vld [vmem:[%s349 + $0x58] sm:%s342]
                %374 = vst [vmem:[%s350 + $0x2c] sm:%s342] %v373
                %v375 = vld [vmem:[%s349 + $0x60] sm:%s342]
                %376 = vst [vmem:[%s350 + $0x30] sm:%s342] %v375
                %v377 = vld [vmem:[%s349 + $0x68] sm:%s342]
                %378 = vst [vmem:[%s350 + $0x34] sm:%s342] %v377
                %v379 = vld [vmem:[%s349 + $0x70] sm:%s342]
                %380 = vst [vmem:[%s350 + $0x38] sm:%s342] %v379
                %v381 = vld [vmem:[%s349 + $0x78] sm:%s342]
                %382 = vst [vmem:[%s350 + $0x3c] sm:%s342] %v381
              $region45: #{grouped_batched_dmoe.1} parent=39 // loop_footer
                %s348 = sadd.s32 1, %s344
              $region46: #{grouped_batched_dmoe.1} parent=39 // loop_footer_branch
                %343 = sbr.rel target = $region42
              $region47: #{grouped_batched_dmoe.1} parent=39 // loop_exit
                _
            $region40: #{grouped_batched_dmoe.1} parent=31 // pred_fallthru
              _
          $region32: #{grouped_batched_dmoe.1} parent=27 // pred_fallthru
            _
          %435 = vnop
        $region28: #{grouped_batched_dmoe.1} parent=19 // pred_fallthru
          _
        // Predicated region
        $region66: #{grouped_batched_dmoe.1} parent=19 // pred_check
          %p436 = pneg %p182
        $region67: #{grouped_batched_dmoe.1} parent=19 // pred_check_branch
          %438 = sbr.rel (%p436) target = $region69
        $region68: #{grouped_batched_dmoe.1} parent=19 // pred_region
          %s439 = sshra.s32 %s39, 7
          %s440 = sand.u32 %s39, 127
          %s441 = sadd.s32 %s439, %s38
          %s442 = smul.u32 %s441, 128
          %s443 = sshra.s32 %s39, 7
          %s444 = sand.u32 %s39, 127
          %s445 = sadd.s32 %s442, %s444
          %s446 = sld [smem:[#allocation3 + %s445]]
          %s447 = sld [smem:[#allocation4 + %s445]]
          %s448 = smul.u32 %s446, %s40
          %s449 = ssub.s32 1, %s446
          %s450 = sld [smem:[#allocation5 + %s445]]
          %s451 = smul.u32 %s449, %s450
          %s452 = sadd.s32 %s448, %s451
          %s453 = smul.u32 16, %s452
          %p454 = scmp.lt.s32.totalorder %s447, 3
          %s455 = scalar_select %p454, %s447, 3
          %p456 = scmp.lt.s32.totalorder %s453, 31
          %s457 = scalar_select %p456, %s453, 31
          %s458 = smul.addr %s455, 32
          %s459 = sadd.s32 %s457, %s458
          %s460 = smul.addr %s459, 4
          %s461 = scalar_lea.vmem %s5, %s460
          %s462 = sshra.s32 %s39, 7
          %s463 = sand.u32 %s39, 127
          %s464 = sadd.s32 %s462, %s38
          %s465 = smul.u32 %s464, 128
          %s466 = sshra.s32 %s39, 7
          %s467 = sand.u32 %s39, 127
          %s468 = sadd.s32 %s465, %s467
          %s469 = sld [smem:[#allocation3 + %s468]]
          %s470 = sld [smem:[#allocation4 + %s468]]
          %s471 = smul.u32 %s469, %s40
          %s472 = ssub.s32 1, %s469
          %s473 = sld [smem:[#allocation5 + %s468]]
          %s474 = smul.u32 %s472, %s473
          %s475 = sadd.s32 %s471, %s474
          %s476 = smul.u32 16, %s475
        $region69: #{grouped_batched_dmoe.1} parent=19 // pred_fallthru
          _
        // Predicated region
        $region70: #{grouped_batched_dmoe.1} parent=19 // pred_check
          %p477 = pneg %p226
        $region71: #{grouped_batched_dmoe.1} parent=19 // pred_check_branch
          %479 = sbr.rel (%p477) target = $region73
        $region72: #{grouped_batched_dmoe.1} parent=19 // pred_region
          %s480 = sshra.s32 %s39, 7
          %s481 = sand.u32 %s39, 127
          %s482 = sadd.s32 %s480, %s38
          %s483 = smul.u32 %s482, 128
          %s484 = sshra.s32 %s39, 7
          %s485 = sand.u32 %s39, 127
          %s486 = sadd.s32 %s483, %s485
          %s487 = sld [smem:[#allocation4 + %s486]]
          %s488 = smul.u32 2, %s38
          %p489 = scmp.lt.s32.totalorder %s487, 3
          %s490 = scalar_select %p489, %s487, 3
          %p491 = scmp.lt.s32.totalorder %s488, 3
          %s492 = scalar_select %p491, %s488, 3
          %s493 = smul.addr %s490, 4
          %s494 = sadd.s32 %s492, %s493
          %s495 = smul.addr %s494, 8
          %s496 = scalar_lea.vmem %s6, %s495
          %s497 = sshra.s32 %s39, 7
          %s498 = sand.u32 %s39, 127
          %s499 = sadd.s32 %s497, %s38
          %s500 = smul.u32 %s499, 128
          %s501 = sshra.s32 %s39, 7
          %s502 = sand.u32 %s39, 127
          %s503 = sadd.s32 %s500, %s502
          %s504 = sld [smem:[#allocation4 + %s503]]
          %s505 = smul.u32 2, %s38
        $region73: #{grouped_batched_dmoe.1} parent=19 // pred_fallthru
          _
      $region20: #{grouped_batched_dmoe.1} parent=5 // pred_fallthru
        _
      %p506 = scmp.le.s32.totalorder 1, %s31
      %p507 = scmp.lt.s32.totalorder %s31, 17
      %p508 = pnand %p506, %p507
      %p509 = pneg %p508
      // Predicated region
      $region74: #{grouped_batched_dmoe.1} parent=5 // pred_check
        _
      $region75: #{grouped_batched_dmoe.1} parent=5 // pred_check_branch
        %511 = sbr.rel (%p508) target = $region77
      $region76: #{grouped_batched_dmoe.1} parent=5 // pred_region
        %s512 = ssub.s32 %s31, 1
        %s513 = sand.u32 %s119, 1
        %s514 = sand.u32 %s119, 1
        %s515 = smul.addr %s514, 64
        %s516 = scalar_lea.vmem [#allocation6], %s515
        // Predicated region
        $region78: #{grouped_batched_dmoe.1} parent=76 // pred_check
          %p517 = pneg %p132
        $region79: #{grouped_batched_dmoe.1} parent=76 // pred_check_branch
          %519 = sbr.rel (%p517) target = $region81
        $region80: #{grouped_batched_dmoe.1} parent=76 // pred_region
          _
        $region81: #{grouped_batched_dmoe.1} parent=76 // pred_fallthru
          _
        %s520 = smul.u32 2, %s41
        %p521 = scmp.lt.s32.totalorder %s520, 3
        %s522 = scalar_select %p521, %s520, 3
        %s523 = smul.addr %s522, 4
        %s524 = scalar_lea.vmem %s3, %s523
        %p525 = pneg %p76
        %p526 = pneg %p73
        %s527 = sand.u32 %s119, 1
        %s528 = sand.u32 %s119, 1
        %s529 = smul.addr %s528, 64
        %s530 = scalar_lea.vmem [#allocation6], %s529
        %p531 = pneg %p132
        %p532 = pneg %p129
        %s533 = sshra.s32 %s42, 7
        %s534 = sand.u32 %s42, 127
        %s535 = sadd.s32 %s533, %s41
        %s536 = smul.u32 %s535, 128
        %s537 = sshra.s32 %s42, 7
        %s538 = sand.u32 %s42, 127
        %s539 = sadd.s32 %s536, %s538
        %s540 = sld [smem:[#allocation3 + %s539]]
        %s541 = sld [smem:[#allocation4 + %s539]]
        %s542 = smul.u32 %s540, %s43
        %s543 = ssub.s32 1, %s540
        %s544 = sld [smem:[#allocation5 + %s539]]
        %s545 = smul.u32 %s543, %s544
        %s546 = sadd.s32 %s542, %s545
        %s547 = smul.u32 16, %s546
        %p548 = scmp.lt.s32.totalorder %s541, 3
        %s549 = scalar_select %p548, %s541, 3
        %p550 = scmp.lt.s32.totalorder %s547, 31
        %s551 = scalar_select %p550, %s547, 31
        %s552 = smul.addr %s549, 32
        %s553 = sadd.s32 %s551, %s552
        %s554 = smul.addr %s553, 4
        %s555 = scalar_lea.vmem %s5, %s554
        %p556 = pneg %p188
        %p557 = pneg %p185
        %s558 = sshra.s32 %s42, 7
        %s559 = sand.u32 %s42, 127
        %s560 = sadd.s32 %s558, %s41
        %s561 = smul.u32 %s560, 128
        %s562 = sshra.s32 %s42, 7
        %s563 = sand.u32 %s42, 127
        %s564 = sadd.s32 %s561, %s563
        %s565 = sld [smem:[#allocation4 + %s564]]
        %s566 = smul.u32 2, %s41
        %p567 = scmp.lt.s32.totalorder %s565, 3
        %s568 = scalar_select %p567, %s565, 3
        %p569 = scmp.lt.s32.totalorder %s566, 3
        %s570 = scalar_select %p569, %s566, 3
        %s571 = smul.addr %s568, 4
        %s572 = sadd.s32 %s570, %s571
        %s573 = smul.addr %s572, 8
        %s574 = scalar_lea.vmem %s6, %s573
        %p575 = pneg %p232
        %p576 = pneg %p229
        %p577 = pneg %p253
        %p578 = pneg %p250
        %p579 = pneg %p279
        %p580 = pneg %p276
        %s581 = sand.u32 %s266, 1
        %s582 = scalar_lea.sflag [#allocation8], %s581
        %s583 = sand.u32 %s266, 1
        %s584 = smul.addr %s583, 16
        %s585 = scalar_lea.vmem [#allocation7], %s584
        %s586 = smul.u32 2, %s41
        %p587 = scmp.lt.s32.totalorder %s586, 3
        %s588 = scalar_select %p587, %s586, 3
        %s589 = smul.addr %s588, 4
        %s590 = scalar_lea.vmem %s3, %s589
        %s591 = smul.u32 2, %s41
        %s592 = sshra.s32 %s42, 7
        %s593 = sand.u32 %s42, 127
        %s594 = sadd.s32 %s592, %s41
        %s595 = smul.u32 %s594, 128
        %s596 = sshra.s32 %s42, 7
        %s597 = sand.u32 %s42, 127
        %s598 = sadd.s32 %s595, %s597
        %s599 = sld [smem:[#allocation3 + %s598]]
        %s600 = sld [smem:[#allocation4 + %s598]]
        %s601 = smul.u32 %s599, %s43
        %s602 = ssub.s32 1, %s599
        %s603 = sld [smem:[#allocation5 + %s598]]
        %s604 = smul.u32 %s602, %s603
        %s605 = sadd.s32 %s601, %s604
        %s606 = sshra.s32 %s42, 7
        %s607 = sand.u32 %s42, 127
        %s608 = sadd.s32 %s606, %s41
        %s609 = smul.u32 %s608, 128
        %s610 = sshra.s32 %s42, 7
        %s611 = sand.u32 %s42, 127
        %s612 = sadd.s32 %s609, %s611
        %s613 = sld [smem:[#allocation3 + %s612]]
        %s614 = sld [smem:[#allocation4 + %s612]]
        %s615 = smul.u32 %s613, %s43
        %s616 = ssub.s32 1, %s613
        %s617 = sld [smem:[#allocation5 + %s612]]
        %s618 = smul.u32 %s616, %s617
        %s619 = sadd.s32 %s615, %s618
        %s620 = smul.u32 16, %s619
        %p621 = scmp.lt.s32.totalorder %s614, 3
        %s622 = scalar_select %p621, %s614, 3
        %p623 = scmp.lt.s32.totalorder %s620, 31
        %s624 = scalar_select %p623, %s620, 31
        %s625 = smul.addr %s622, 32
        %s626 = sadd.s32 %s624, %s625
        %s627 = smul.addr %s626, 4
        %s628 = scalar_lea.vmem %s5, %s627
        %s629 = sshra.s32 %s42, 7
        %s630 = sand.u32 %s42, 127
        %s631 = sadd.s32 %s629, %s41
        %s632 = smul.u32 %s631, 128
        %s633 = sshra.s32 %s42, 7
        %s634 = sand.u32 %s42, 127
        %s635 = sadd.s32 %s632, %s634
        %s636 = sld [smem:[#allocation3 + %s635]]
        %s637 = sld [smem:[#allocation4 + %s635]]
        %s638 = smul.u32 %s636, %s43
        %s639 = ssub.s32 1, %s636
        %s640 = sld [smem:[#allocation5 + %s635]]
        %s641 = smul.u32 %s639, %s640
        %s642 = sadd.s32 %s638, %s641
        %s643 = smul.u32 16, %s642
        %s644 = sshra.s32 %s42, 7
        %s645 = sand.u32 %s42, 127
        %s646 = sadd.s32 %s644, %s41
        %s647 = smul.u32 %s646, 128
        %s648 = sshra.s32 %s42, 7
        %s649 = sand.u32 %s42, 127
        %s650 = sadd.s32 %s647, %s649
        %s651 = sld [smem:[#allocation4 + %s650]]
        %s652 = smul.u32 2, %s41
        %p653 = scmp.lt.s32.totalorder %s651, 3
        %s654 = scalar_select %p653, %s651, 3
        %p655 = scmp.lt.s32.totalorder %s652, 3
        %s656 = scalar_select %p655, %s652, 3
        %s657 = smul.addr %s654, 4
        %s658 = sadd.s32 %s656, %s657
        %s659 = smul.addr %s658, 8
        %s660 = scalar_lea.vmem %s6, %s659
        %s661 = sshra.s32 %s42, 7
        %s662 = sand.u32 %s42, 127
        %s663 = sadd.s32 %s661, %s41
        %s664 = smul.u32 %s663, 128
        %s665 = sshra.s32 %s42, 7
        %s666 = sand.u32 %s42, 127
        %s667 = sadd.s32 %s664, %s666
        %s668 = sld [smem:[#allocation4 + %s667]]
        %s669 = smul.u32 2, %s41
        %s670 = smul.u32 2, %s41
        %p672 = scmp.eq.s32.totalorder %s42, 0
        %p673 = scmp.eq.s32.totalorder %s43, 0
        %p674 = pnand %p672, %p673
        %p675 = pneg %p674
        // Predicated region
        $region82: #{grouped_batched_dmoe.1} parent=76 // pred_check
          _
        $region83: #{grouped_batched_dmoe.1} parent=76 // pred_check_branch
          %677 = sbr.rel (%p674) target = $region85
        $region84: #{grouped_batched_dmoe.1} parent=76 // pred_region
          %678 = vst [vmem:[%s585] sm:$0xff] 0.0
          %679 = vst [vmem:[%s585 + $0x8] sm:$0xff] 0.0
        $region85: #{grouped_batched_dmoe.1} parent=76 // pred_fallthru
          _
        %s680 = sshra.s32 %s42, 7
        %s681 = sand.u32 %s42, 127
        %s682 = sadd.s32 %s680, %s41
        %s683 = smul.u32 %s682, 128
        %s684 = sshra.s32 %s42, 7
        %s685 = sand.u32 %s42, 127
        %s686 = sadd.s32 %s683, %s685
        %s687 = sld [smem:[#allocation3 + %s686]]
        %p688 = scmp.gt.s32.totalorder %s687, 0
        // Predicated region
        $region86: #{grouped_batched_dmoe.1} parent=76 // pred_check
          %p689 = pneg %p688
        $region87: #{grouped_batched_dmoe.1} parent=76 // pred_check_branch
          %691 = sbr.rel (%p689) target = $region89
        $region88: #{grouped_batched_dmoe.1} parent=76 // pred_region
          %v692 = vld [vmem:[%s590] sm:$0xf]
          %v693 = vld [vmem:[%s590 + $0x4] sm:$0xf]
          %v694 = vld [vmem:[%s516] sm:$0xf]
          %v695 = vld [vmem:[%s516 + $0x4] sm:$0xf]
          %v696 = vld [vmem:[%s516 + $0x8] sm:$0xf]
          %v697 = vld [vmem:[%s516 + $0xc] sm:$0xf]
          %v698 = vld [vmem:[%s516 + $0x10] sm:$0xf]
          %v699 = vld [vmem:[%s516 + $0x14] sm:$0xf]
          %v700 = vld [vmem:[%s516 + $0x18] sm:$0xf]
          %v701 = vld [vmem:[%s516 + $0x1c] sm:$0xf]
          %v702 = vld [vmem:[%s516 + $0x20] sm:$0xf]
          %v703 = vld [vmem:[%s516 + $0x24] sm:$0xf]
          %v704 = vld [vmem:[%s516 + $0x28] sm:$0xf]
          %v705 = vld [vmem:[%s516 + $0x2c] sm:$0xf]
          %v706 = vld [vmem:[%s516 + $0x30] sm:$0xf]
          %v707 = vld [vmem:[%s516 + $0x34] sm:$0xf]
          %v708 = vld [vmem:[%s516 + $0x38] sm:$0xf]
          %v709 = vld [vmem:[%s516 + $0x3c] sm:$0xf]
          %v712 = vunpack.c.l.b16 %v692
          %v713 = vunpack.c.l.b16 %v693
          %v714 = vpack.c.b16 %v713, %v712
          %v732 = vunpack.c.l.b16 %v694
          %v733 = vunpack.c.l.b16 %v695
          %v734 = vunpack.c.l.b16 %v696
          %v735 = vunpack.c.l.b16 %v697
          %v736 = vunpack.c.l.b16 %v698
          %v737 = vunpack.c.l.b16 %v699
          %v738 = vunpack.c.l.b16 %v700
          %v739 = vunpack.c.l.b16 %v701
          %v740 = vunpack.c.l.b16 %v702
          %v741 = vunpack.c.l.b16 %v703
          %v742 = vunpack.c.l.b16 %v704
          %v743 = vunpack.c.l.b16 %v705
          %v744 = vunpack.c.l.b16 %v706
          %v745 = vunpack.c.l.b16 %v707
          %v746 = vunpack.c.l.b16 %v708
          %v747 = vunpack.c.l.b16 %v709
          %v748 = vpack.c.b16 %v733, %v732
          %v749 = vpack.c.b16 %v735, %v734
          %v750 = vpack.c.b16 %v737, %v736
          %v751 = vpack.c.b16 %v739, %v738
          %v752 = vpack.c.b16 %v741, %v740
          %v753 = vpack.c.b16 %v743, %v742
          %v754 = vpack.c.b16 %v745, %v744
          %v755 = vpack.c.b16 %v747, %v746
          %764 = vmatprep.subr.bf16.mxu0 0
          %765 = vmatpush1.bf16.msra.mxu0 %v755
          %766 = vmatprep.subr.bf16.mxu0 0
          %767 = vmatpush1.bf16.msra.mxu0 %v754
          %768 = vmatprep.subr.bf16.mxu0 0
          %769 = vmatpush1.bf16.msra.mxu0 %v753
          %770 = vmatprep.subr.bf16.mxu0 0
          %771 = vmatpush1.bf16.msra.mxu0 %v752
          %772 = vmatprep.subr.bf16.mxu0 0
          %773 = vmatpush1.bf16.msra.mxu0 %v751
          %774 = vmatprep.subr.bf16.mxu0 0
          %775 = vmatpush1.bf16.msra.mxu0 %v750
          %776 = vmatprep.subr.bf16.mxu0 0
          %777 = vmatpush1.bf16.msra.mxu0 %v749
          %778 = vmatprep.subr.bf16.mxu0 0
          %779 = vmatpush1.bf16.msra.mxu0 %v748
          %780 = vmatprep.subr.bf16.mxu0 0
          %781 = vmatpush2.bf16.msra.mxu0 0
          %782 = vmatprep.subr.bf16.mxu0 0
          %783 = vmatpush2.bf16.msra.mxu0 0
          %784 = vmatprep.subr.bf16.mxu0 0
          %785 = vmatpush2.bf16.msra.mxu0 0
          %786 = vmatprep.subr.bf16.mxu0 0
          %787 = vmatpush2.bf16.msra.mxu0 0
          %788 = vmatprep.subr.bf16.mxu0 0
          %789 = vmatpush2.bf16.msra.mxu0 0
          %790 = vmatprep.subr.bf16.mxu0 0
          %791 = vmatpush2.bf16.msra.mxu0 0
          %792 = vmatprep.subr.bf16.mxu0 0
          %793 = vmatpush2.bf16.msra.mxu0 0
          %794 = vmatprep.subr.bf16.mxu0 0
          %795 = vmatpush2.bf16.msra.mxu0 0
          %796 = vmatprep.mubr.bf16.mxu0 0
          %797 = vmatmul.mubr.bf16.gmra.mxu0 %v714
          %v798 = vpop.f32.mrf.mxu0
          %v799 = vadd.f32 0.0, %v798
          %v800 = vpop.f32.mrf.mxu0
          %v801 = vpop.f32.mrf.mxu0
          %v802 = vadd.f32 0.0, %v801
          %v803 = vpop.f32.mrf.mxu0
          %804 = vdwg.mxu0
          %v805 = vmul.f32 %v799, %v799
          %v806 = vmul.f32 %v802, %v802
          %v807 = vmul.f32 %v799, %v805
          %v808 = vmul.f32 %v802, %v806
          %v809 = vmul.f32 %v807, 0.044715
          %v810 = vmul.f32 %v808, 0.044715
          %v811 = vadd.f32 %v799, %v809
          %v812 = vadd.f32 %v802, %v810
          %v813 = vmul.f32 %v811, 0.7978846
          %v814 = vmul.f32 %v812, 0.7978846
          %v815 = vtanh.pop %v813
          %v816 = vtanh.pop %v814
          %v817 = vadd.f32 %v815, 1.0
          %v818 = vadd.f32 %v816, 1.0
          %v819 = vmul.f32 %v817, 0.5
          %v820 = vmul.f32 %v818, 0.5
          %v821 = vmul.f32 %v799, %v819
          %v822 = vmul.f32 %v802, %v820
          %v823 = vpack.c.bf16 %v822, %v821
          %v824 = vld [vmem:[%s628] sm:$0xf]
          %v825 = vld [vmem:[%s628 + $0x4] sm:$0xf]
          %v826 = vld [vmem:[%s628 + $0x8] sm:$0xf]
          %v827 = vld [vmem:[%s628 + $0xc] sm:$0xf]
          %v828 = vld [vmem:[%s628 + $0x10] sm:$0xf]
          %v829 = vld [vmem:[%s628 + $0x14] sm:$0xf]
          %v830 = vld [vmem:[%s628 + $0x18] sm:$0xf]
          %v831 = vld [vmem:[%s628 + $0x1c] sm:$0xf]
          %v832 = vld [vmem:[%s628 + $0x20] sm:$0xf]
          %v833 = vld [vmem:[%s628 + $0x24] sm:$0xf]
          %v834 = vld [vmem:[%s628 + $0x28] sm:$0xf]
          %v835 = vld [vmem:[%s628 + $0x2c] sm:$0xf]
          %v836 = vld [vmem:[%s628 + $0x30] sm:$0xf]
          %v837 = vld [vmem:[%s628 + $0x34] sm:$0xf]
          %v838 = vld [vmem:[%s628 + $0x38] sm:$0xf]
          %v839 = vld [vmem:[%s628 + $0x3c] sm:$0xf]
          %v856 = vunpack.c.l.b16 %v824
          %v857 = vunpack.c.l.b16 %v825
          %v858 = vunpack.c.l.b16 %v826
          %v859 = vunpack.c.l.b16 %v827
          %v860 = vunpack.c.l.b16 %v828
          %v861 = vunpack.c.l.b16 %v829
          %v862 = vunpack.c.l.b16 %v830
          %v863 = vunpack.c.l.b16 %v831
          %v864 = vunpack.c.l.b16 %v832
          %v865 = vunpack.c.l.b16 %v833
          %v866 = vunpack.c.l.b16 %v834
          %v867 = vunpack.c.l.b16 %v835
          %v868 = vunpack.c.l.b16 %v836
          %v869 = vunpack.c.l.b16 %v837
          %v870 = vunpack.c.l.b16 %v838
          %v871 = vunpack.c.l.b16 %v839
          %v872 = vpack.c.b16 %v857, %v856
          %v873 = vpack.c.b16 %v859, %v858
          %v874 = vpack.c.b16 %v861, %v860
          %v875 = vpack.c.b16 %v863, %v862
          %v876 = vpack.c.b16 %v865, %v864
          %v877 = vpack.c.b16 %v867, %v866
          %v878 = vpack.c.b16 %v869, %v868
          %v879 = vpack.c.b16 %v871, %v870
          %888 = vmatprep.subr.bf16.mxu0 0
          %889 = vmatpush1.bf16.msra.mxu0 %v879
          %890 = vmatprep.subr.bf16.mxu0 0
          %891 = vmatpush1.bf16.msra.mxu0 %v878
          %892 = vmatprep.subr.bf16.mxu0 0
          %893 = vmatpush1.bf16.msra.mxu0 %v877
          %894 = vmatprep.subr.bf16.mxu0 0
          %895 = vmatpush1.bf16.msra.mxu0 %v876
          %896 = vmatprep.subr.bf16.mxu0 0
          %897 = vmatpush1.bf16.msra.mxu0 %v875
          %898 = vmatprep.subr.bf16.mxu0 0
          %899 = vmatpush1.bf16.msra.mxu0 %v874
          %900 = vmatprep.subr.bf16.mxu0 0
          %901 = vmatpush1.bf16.msra.mxu0 %v873
          %902 = vmatprep.subr.bf16.mxu0 0
          %903 = vmatpush1.bf16.msra.mxu0 %v872
          %904 = vmatprep.subr.bf16.mxu0 0
          %905 = vmatpush2.bf16.msra.mxu0 0
          %906 = vmatprep.subr.bf16.mxu0 0
          %907 = vmatpush2.bf16.msra.mxu0 0
          %908 = vmatprep.subr.bf16.mxu0 0
          %909 = vmatpush2.bf16.msra.mxu0 0
          %910 = vmatprep.subr.bf16.mxu0 0
          %911 = vmatpush2.bf16.msra.mxu0 0
          %912 = vmatprep.subr.bf16.mxu0 0
          %913 = vmatpush2.bf16.msra.mxu0 0
          %914 = vmatprep.subr.bf16.mxu0 0
          %915 = vmatpush2.bf16.msra.mxu0 0
          %916 = vmatprep.subr.bf16.mxu0 0
          %917 = vmatpush2.bf16.msra.mxu0 0
          %918 = vmatprep.subr.bf16.mxu0 0
          %919 = vmatpush2.bf16.msra.mxu0 0
          %920 = vmatprep.mubr.bf16.mxu0 0
          %921 = vmatmul.mubr.bf16.gmra.mxu0 %v823
          %v922 = vpop.f32.mrf.mxu0
          %v923 = vadd.f32 0.0, %v922
          %v924 = vpop.f32.mrf.mxu0
          %v925 = vpop.f32.mrf.mxu0
          %v926 = vadd.f32 0.0, %v925
          %v927 = vpop.f32.mrf.mxu0
          %928 = vdwg.mxu0
          %v929 = vld [vmem:[%s585] sm:$0xff]
          %v930 = vld [vmem:[%s585 + $0x8] sm:$0xff]
          %v931 = vld [vmem:[%s660] sm:$0xff]
          %v932 = vld [vmem:[%s660 + $0x8] sm:$0xff]
          %934 = vset.pattern.permute.xlu0 0
          %935 = vperm.xlu0 %934, %v931
          %v936 = vpop.permute.xlu0 %935
          %939 = vset.pattern.permute.xlu0 0
          %940 = vperm.xlu0 %939, %v932
          %v941 = vpop.permute.xlu0 %940
          %v943 = vmul.f32 %v936, %v923
          %v944 = vmul.f32 %v941, %v926
          %v945 = vadd.f32 %v929, %v943
          %v946 = vadd.f32 %v930, %v944
          %947 = vst [vmem:[%s585] sm:$0xff] %v945
          %948 = vst [vmem:[%s585 + $0x8] sm:$0xff] %v946
        $region89: #{grouped_batched_dmoe.1} parent=76 // pred_fallthru
          _
        %p949 = scmp.eq.s32.totalorder %s42, 3
        %p950 = scmp.eq.s32.totalorder %s43, 1
        %p951 = pnand %p949, %p950
        %p952 = pneg %p951
        // Predicated region
        $region90: #{grouped_batched_dmoe.1} parent=76 // pred_check
          _
        $region91: #{grouped_batched_dmoe.1} parent=76 // pred_check_branch
          %954 = sbr.rel (%p951) target = $region93
        $region92: #{grouped_batched_dmoe.1} parent=76 // pred_region
          %v955 = vld [vmem:[%s585] sm:$0xff]
          %v956 = vld [vmem:[%s585 + $0x8] sm:$0xff]
          %v957 = vld [vmem:[%s7] sm:$0x1]
          %v959 = vlaneseq
          %v960 = vshrl.u32 %v959, 7
          %v961 = vsub.s32 0, %v960
          %v962 = vrot.slane %v957, %v961
          %v964 = vadd.f32 %v955, %v962
          %v965 = vadd.f32 %v956, %v962
          %966 = vst [vmem:[%s585] sm:$0xff] %v964
          %967 = vst [vmem:[%s585 + $0x8] sm:$0xff] %v965
        $region93: #{grouped_batched_dmoe.1} parent=76 // pred_fallthru
          _
        %s968 = sand.u32 %s266, 1
        %s969 = scalar_lea.sflag [#allocation8], %s968
        %s970 = sand.u32 %s266, 1
        %s971 = smul.addr %s970, 16
        %s972 = scalar_lea.vmem [#allocation7], %s971
        // Predicated region
        $region94: #{grouped_batched_dmoe.1} parent=76 // pred_check
          %p973 = pneg %p276
        $region95: #{grouped_batched_dmoe.1} parent=76 // pred_check_branch
          %975 = sbr.rel (%p973) target = $region97
        $region96: #{grouped_batched_dmoe.1} parent=76 // pred_region
          %s976 = smul.u32 2, %s41
          %s978 = ssub.s32 256, 256
          %979 = vsyncadd %s969, %s978
          %s980 = smul.addr %s976, 128
          %s981 = scalar_lea.hbm %s8, %s980
          %s982 = sshll.u32 %s972, 4
          %s983 = int_to_ptr.vmem [resolvable:$true] %s982
          %988 = dma.vmem_to_hbm [thread:$0]  %s983, 256, %s981, %s969, 128, 128, 8
        $region97: #{grouped_batched_dmoe.1} parent=76 // pred_fallthru
          _
      $region77: #{grouped_batched_dmoe.1} parent=5 // pred_fallthru
        _
      %p989 = scmp.le.s32.totalorder 2, %s31
      // Predicated region
      $region98: #{grouped_batched_dmoe.1} parent=5 // pred_check
        %p990 = pneg %p989
      $region99: #{grouped_batched_dmoe.1} parent=5 // pred_check_branch
        %992 = sbr.rel (%p990) target = $region101
      $region100: #{grouped_batched_dmoe.1} parent=5 // pred_region
        %s993 = ssub.s32 %s31, 2
        // Predicated region
        $region102: #{grouped_batched_dmoe.1} parent=100 // pred_check
          %p994 = pneg %p282
        $region103: #{grouped_batched_dmoe.1} parent=100 // pred_check_branch
          %996 = sbr.rel (%p994) target = $region105
        $region104: #{grouped_batched_dmoe.1} parent=100 // pred_region
          %s997 = sand.u32 %s267, 1
          %s998 = scalar_lea.sflag [#allocation8], %s997
          %s999 = sand.u32 %s267, 1
          %s1000 = smul.addr %s999, 16
          %s1001 = scalar_lea.vmem [#allocation7], %s1000
          %1002 = dma.done %s998, 256
        $region105: #{grouped_batched_dmoe.1} parent=100 // pred_fallthru
          _
      $region101: #{grouped_batched_dmoe.1} parent=5 // pred_fallthru
        _
    $region6: #{grouped_batched_dmoe.1} parent=1 // loop_footer
      %s35 = sadd.s32 1, %s31
    $region7: #{grouped_batched_dmoe.1} parent=1 // loop_footer_branch
      %30 = sbr.rel target = $region3
    $region8: #{grouped_batched_dmoe.1} parent=1 // loop_exit
      _
    %1003 = vsyncpa [#allocation8], 1
    %s1004 = scalar_lea.sflag [#allocation8], 1
    %1005 = vsyncpa %s1004, 1

</llo_original>
